<compile_context>
chip_gen: v6e
topology: v6e:2x2x1
jax: 0.10.0
libtpu: 0.0.40
codegen_flags: <defaults>
</compile_context>

<pallas_src>
import functools

import jax
import jax.numpy as jnp
from jax.experimental import pallas as pl
from jax.experimental.pallas import tpu as pltpu


# ---------------------------------------------------------------------------
# Kernels
# ---------------------------------------------------------------------------

def _in1d_kernel_cl(x_ref, w_ref, b_ref, o_ref, *, eps):
    """Length-on-lanes layout. x_ref: (1, TC, L); w_ref/b_ref: (TC, 1)."""
    x = x_ref[...].astype(jnp.float32)                              # (1, TC, L)
    mean = jnp.mean(x, axis=-1, keepdims=True)                      # (1, TC, 1)
    centered = x - mean                                             # lives only for var
    var = jnp.mean(centered * centered, axis=-1, keepdims=True)     # biased (unbiased=False)
    inv_std = jax.lax.rsqrt(var + eps)                              # EUP
    w = w_ref[...][None]                                            # (1, TC, 1)
    b = b_ref[...][None]
    scale = w * inv_std                                             # tiny (1, TC, 1) math
    shift = b - mean * scale
    o_ref[...] = (x * scale + shift).astype(o_ref.dtype)            # 2 full-tile passes


def _in1d_kernel_lc(x_ref, w_ref, b_ref, o_ref, *, eps):
    """Channels-on-lanes layout. x_ref: (1, L, TC); w_ref/b_ref: (1, TC)."""
    x = x_ref[...].astype(jnp.float32)                              # (1, L, TC)
    mean = jnp.mean(x, axis=1, keepdims=True)                       # (1, 1, TC)
    centered = x - mean
    var = jnp.mean(centered * centered, axis=1, keepdims=True)
    inv_std = jax.lax.rsqrt(var + eps)
    w = w_ref[...][:, None, :]                                      # (1, 1, TC)
    b = b_ref[...][:, None, :]
    scale = w * inv_std
    shift = b - mean * scale
    o_ref[...] = (x * scale + shift).astype(o_ref.dtype)


# ---------------------------------------------------------------------------
# Wrapper
# ---------------------------------------------------------------------------

_TILE_BUDGET_BYTES = 2 << 20          # ~2 MiB per input tile (x double-buffered + out fits easily)
_VMEM_LIMIT_BYTES = 32 * 1024 * 1024  # safe on v5e / v6e / v7x (v7x physical VMEM is 64 MiB)


def _choose_channel_tile(C, L, itemsize, align):
    """Largest channel tile (multiple of `align`, or full C) within the tile budget."""
    row_bytes = max(1, L * itemsize)
    if C * row_bytes <= _TILE_BUDGET_BYTES:
        return C
    max_rows = max(align, (_TILE_BUDGET_BYTES // row_bytes) // align * align)
    return int(min(C, max_rows))


def _cost_estimate(N, C, L, itemsize):
    return pl.CostEstimate(
        flops=int(7 * N * C * L),
        transcendentals=int(N * C),
        bytes_accessed=int(2 * N * C * L * itemsize + 2 * C * 4),
    )


def instance_norm1d(x, weight, bias, eps=1e-5, channel_tile=None):
    """x: (N, C, L); weight, bias: (C,). Returns (N, C, L) in x.dtype."""
    N, C, L = x.shape
    itemsize = jnp.dtype(x.dtype).itemsize
    compiler_params = pltpu.CompilerParams(
        dimension_semantics=("parallel", "parallel"),
        vmem_limit_bytes=_VMEM_LIMIT_BYTES,
    )
    cost = _cost_estimate(N, C, L, itemsize)

    # Lane-dense path: if L is far from 128-aligned but C is wide, put channels on
    # lanes so the output stores are full-lane (unmasked) `vst`.
    use_channels_on_lanes = (L % 128 != 0) and (C >= 128)

    if use_channels_on_lanes:
        x_t = jnp.transpose(x, (0, 2, 1))                            # (N, L, C) layout plumbing
        w2 = weight.reshape(1, C).astype(jnp.float32)
        b2 = bias.reshape(1, C).astype(jnp.float32)
        tc = _choose_channel_tile(C, L, itemsize, align=128)
        kernel = functools.partial(_in1d_kernel_lc, eps=eps)
        out_t = pl.pallas_call(
            kernel,
            out_shape=jax.ShapeDtypeStruct((N, L, C), x.dtype),
            grid_spec=pltpu.PrefetchScalarGridSpec(
                num_scalar_prefetch=0,
                grid=(N, pl.cdiv(C, tc)),
                in_specs=[
                    pl.BlockSpec((1, L, tc), lambda n, c: (n, 0, c)),
                    pl.BlockSpec((1, tc), lambda n, c: (0, c)),
                    pl.BlockSpec((1, tc), lambda n, c: (0, c)),
                ],
                out_specs=pl.BlockSpec((1, L, tc), lambda n, c: (n, 0, c)),
            ),
            compiler_params=compiler_params,
            cost_estimate=cost,
        )(x_t, w2, b2)
        return jnp.transpose(out_t, (0, 2, 1))

    # Default path: length on lanes, channel-tiled grid. L stays whole per block so
    # the per-(n, c) reduction never crosses grid steps.
    w2 = weight.reshape(C, 1).astype(jnp.float32)
    b2 = bias.reshape(C, 1).astype(jnp.float32)
    if channel_tile is not None:
        tc = int(channel_tile)
    else:
        tc = _choose_channel_tile(C, L, itemsize, align=8)
    kernel = functools.partial(_in1d_kernel_cl, eps=eps)
    return pl.pallas_call(
        kernel,
        out_shape=jax.ShapeDtypeStruct((N, C, L), x.dtype),
        grid_spec=pltpu.PrefetchScalarGridSpec(
            num_scalar_prefetch=0,
            grid=(N, pl.cdiv(C, tc)),
            in_specs=[
                pl.BlockSpec((1, tc, L), lambda n, c: (n, c, 0)),
                pl.BlockSpec((tc, 1), lambda n, c: (c, 0)),
                pl.BlockSpec((tc, 1), lambda n, c: (c, 0)),
            ],
            out_specs=pl.BlockSpec((1, tc, L), lambda n, c: (n, c, 0)),
        ),
        compiler_params=compiler_params,
        cost_estimate=cost,
    )(x, w2, b2)


# ---------------------------------------------------------------------------
# Pure-JAX reference
# ---------------------------------------------------------------------------

def instance_norm1d_ref(x, weight, bias, eps=1e-5):
    mean = jnp.mean(x, axis=2, keepdims=True)
    var = jnp.mean((x - mean) ** 2, axis=2, keepdims=True)
    y = (x - mean) / jnp.sqrt(var + eps)
    return weight.reshape(1, -1, 1) * y + bias.reshape(1, -1, 1)


if __name__ == "__main__":
    key = jax.random.PRNGKey(0)

    # Primary small case matching the module spec: (N, C, L) = (2, 4, 16).
    N, C, L = 2, 4, 16
    x = jax.random.normal(key, (N, C, L), dtype=jnp.float32)
    weight = jnp.ones((C,), dtype=jnp.float32)   # nn.Parameter(torch.ones)
    bias = jnp.zeros((C,), dtype=jnp.float32)    # nn.Parameter(torch.zeros)

    out = jax.block_until_ready(instance_norm1d(x, weight, bias, eps=1e-5))
    ref = instance_norm1d_ref(x, weight, bias, eps=1e-5)
    assert out.shape == (N, C, L)
    assert jnp.allclose(out, ref, atol=1e-5, rtol=1e-5), "mismatch vs reference (primary)"

    # Secondary checks: exercise both layouts and the channel-tiled grid.
    k1, k2, k3 = jax.random.split(key, 3)

    # (a) channel-tiled direct path: L lane-aligned, grid = (2, 32/8) = (2, 4).
    x2 = jax.random.normal(k1, (2, 32, 256), dtype=jnp.float32)
    w2 = jax.random.normal(k2, (32,), dtype=jnp.float32)
    b2 = jax.random.normal(k3, (32,), dtype=jnp.float32)
    o2 = jax.block_until_ready(instance_norm1d(x2, w2, b2, channel_tile=8))
    assert jnp.allclose(o2, instance_norm1d_ref(x2, w2, b2), atol=1e-4, rtol=1e-4), \
        "mismatch vs reference (channel-tiled path)"

    # (b) lane-dense channels-on-lanes path: small unaligned L, wide C.
    x3 = jax.random.normal(k2, (2, 256, 64), dtype=jnp.float32)
    w3 = jnp.full((256,), 0.5, dtype=jnp.float32)
    b3 = jnp.full((256,), 0.25, dtype=jnp.float32)
    o3 = jax.block_until_ready(instance_norm1d(x3, w3, b3))
    assert jnp.allclose(o3, instance_norm1d_ref(x3, w3, b3), atol=1e-4, rtol=1e-4), \
        "mismatch vs reference (channels-on-lanes path)"

    print("KERNEL_OK")
</pallas_src>

<mosaic_0001>
module attributes {stable_mosaic.version = 11 : i64} {
  func.func @_in1d_kernel_cl(%arg0: i32, %arg1: i32, %arg2: memref<1x4x16xf32, #tpu.memory_space<vmem>>, %arg3: memref<4x1xf32, #tpu.memory_space<vmem>>, %arg4: memref<4x1xf32, #tpu.memory_space<vmem>>, %arg5: memref<1x4x16xf32, #tpu.memory_space<vmem>>) attributes {dimension_semantics = [#tpu.dimension_semantics<parallel>, #tpu.dimension_semantics<parallel>], iteration_bounds = array<i64: 2, 1>, scalar_prefetch = 0 : i64, scratch_operands = 0 : i64, tpu.core_type = #tpu.core_type<tc>, window_params = [{transform_indices = @transform_0, window_bounds = array<i64: 1, 4, 16>}, {transform_indices = @transform_1, window_bounds = array<i64: 4, 1>}, {transform_indices = @transform_2, window_bounds = array<i64: 4, 1>}, {transform_indices = @transform_3, window_bounds = array<i64: 1, 4, 16>}]} {
    %c0 = arith.constant 0 : index
    %c0_0 = arith.constant 0 : index
    %c0_1 = arith.constant 0 : index
    %0 = vector.load %arg2[%c0, %c0_0, %c0_1] : memref<1x4x16xf32, #tpu.memory_space<vmem>>, vector<1x4x16xf32>
    %cst = arith.constant dense<0.000000e+00> : vector<1x4xf32>
    %1 = vector.multi_reduction <add>, %0, %cst [2] : vector<1x4x16xf32> to vector<1x4xf32>
    %2 = vector.shape_cast %1 : vector<1x4xf32> to vector<1x4x1xf32>
    %cst_2 = arith.constant 1.600000e+01 : f32
    %3 = vector.broadcast %cst_2 : f32 to vector<1x4x1xf32>
    %4 = arith.divf %2, %3 : vector<1x4x1xf32>
    %5 = vector.broadcast %4 : vector<1x4x1xf32> to vector<1x4x16xf32>
    %6 = arith.subf %0, %5 : vector<1x4x16xf32>
    %7 = arith.mulf %6, %6 : vector<1x4x16xf32>
    %cst_3 = arith.constant dense<0.000000e+00> : vector<1x4xf32>
    %8 = vector.multi_reduction <add>, %7, %cst_3 [2] : vector<1x4x16xf32> to vector<1x4xf32>
    %9 = vector.shape_cast %8 : vector<1x4xf32> to vector<1x4x1xf32>
    %cst_4 = arith.constant 1.600000e+01 : f32
    %10 = vector.broadcast %cst_4 : f32 to vector<1x4x1xf32>
    %11 = arith.divf %9, %10 : vector<1x4x1xf32>
    %cst_5 = arith.constant 9.99999974E-6 : f32
    %12 = vector.broadcast %cst_5 : f32 to vector<1x4x1xf32>
    %13 = arith.addf %11, %12 : vector<1x4x1xf32>
    %14 = math.rsqrt %13 : vector<1x4x1xf32>
    %c0_6 = arith.constant 0 : index
    %c0_7 = arith.constant 0 : index
    %15 = vector.load %arg3[%c0_6, %c0_7] : memref<4x1xf32, #tpu.memory_space<vmem>>, vector<4x1xf32>
    %16 = vector.shape_cast %15 : vector<4x1xf32> to vector<1x4x1xf32>
    %c0_8 = arith.constant 0 : index
    %c0_9 = arith.constant 0 : index
    %17 = vector.load %arg4[%c0_8, %c0_9] : memref<4x1xf32, #tpu.memory_space<vmem>>, vector<4x1xf32>
    %18 = vector.shape_cast %17 : vector<4x1xf32> to vector<1x4x1xf32>
    %19 = arith.mulf %16, %14 : vector<1x4x1xf32>
    %20 = arith.mulf %4, %19 : vector<1x4x1xf32>
    %21 = arith.subf %18, %20 : vector<1x4x1xf32>
    %22 = vector.broadcast %19 : vector<1x4x1xf32> to vector<1x4x16xf32>
    %23 = arith.mulf %0, %22 : vector<1x4x16xf32>
    %24 = vector.broadcast %21 : vector<1x4x1xf32> to vector<1x4x16xf32>
    %25 = arith.addf %23, %24 : vector<1x4x16xf32>
    %c0_10 = arith.constant 0 : index
    %c0_11 = arith.constant 0 : index
    %c0_12 = arith.constant 0 : index
    %26 = vector.load %arg5[%c0_10, %c0_11, %c0_12] : memref<1x4x16xf32, #tpu.memory_space<vmem>>, vector<1x4x16xf32>
    tpu.vector_store %arg5[%c0_10, %c0_11, %c0_12], %25 {strides = array<i32>} : memref<1x4x16xf32, #tpu.memory_space<vmem>>, vector<1x4x16xf32>,
    return
  }
  func.func @transform_0(%arg0: i32, %arg1: i32) -> (i32, i32, i32) {
    %c0_i32 = arith.constant 0 : i32
    %c0_i32_0 = arith.constant 0 : i32
    return %arg0, %arg1, %c0_i32 : i32, i32, i32
  }
  func.func @transform_1(%arg0: i32, %arg1: i32) -> (i32, i32) {
    %c0_i32 = arith.constant 0 : i32
    %c0_i32_0 = arith.constant 0 : i32
    return %arg1, %c0_i32 : i32, i32
  }
  func.func @transform_2(%arg0: i32, %arg1: i32) -> (i32, i32) {
    %c0_i32 = arith.constant 0 : i32
    %c0_i32_0 = arith.constant 0 : i32
    return %arg1, %c0_i32 : i32, i32
  }
  func.func @transform_3(%arg0: i32, %arg1: i32) -> (i32, i32, i32) {
    %c0_i32 = arith.constant 0 : i32
    %c0_i32_0 = arith.constant 0 : i32
    return %arg0, %arg1, %c0_i32 : i32, i32, i32
  }
}

</mosaic_0001>

<llo_original>
// kernel: tpu_custom_call.1
$region0: #{tpu_custom_call.1}
  #allocation0 [shape = 'u32[]', space=smem, size = 0x4, offset = 0x4, fixed_abs, tag = 'smem constant byte address 0x4 - core index']
  #allocation1 [shape = 'u32[144,128]{1,0:T(1,128)}', space=vmem, size = 0x12000, scoped, tag = 'internal scratch']
  %s0 = inlined_call_operand.vmem [shape: f32[2,4,16], index: 0, kind: input, shape index: {}]
  %s1 = inlined_call_operand.vmem [shape: f32[4,1], index: 1, kind: input, shape index: {}]
  %s2 = inlined_call_operand.vmem [shape: f32[4,1], index: 2, kind: input, shape index: {}]
  %s3 = inlined_call_operand.hbm [shape: f32[2,4,16], index: 3, kind: output, shape index: {}]
  %s4 = sld [smem:[#allocation0]]
  $region45: #{tpu_custom_call.1} parent=0
    _
  %s6 = ssub.s32 1, %s4
  %s7 = scalar_select 0, %s6, %s4
  $region1: #{tpu_custom_call.1} parent=0
    #allocation2 [shape = 'u8[4096]{0}', space=vmem, size = 0x1000, scoped, tag = 'output window, operand 0']
    #allocation3 [shape = 's32[2]{0}', space=sflag, size = 0x8, scoped, tag = 'scoped memory for tpu_custom_call.1']
    %8 = vsyncpa [#allocation3], 0
    %s9 = scalar_lea.sflag [#allocation3], 1
    %10 = vsyncpa %s9, 0
    loop: start=0, step=1, limit=4
    $region2: #{tpu_custom_call.1} parent=1 // loop_pre_header
      _
    $region3: #{tpu_custom_call.1} parent=1 // loop_header
      %s12 = sphi 0, %s16
      %p13 = scmp.ge.s32.totalorder %s12, 4
      %s19 = sphi 0, %s31
      %s20 = sphi 0, %s27
      %s21 = sphi 0, %s19
      %s22 = sphi 0, %s20
      %s23 = sphi 0, %s21
      %s24 = sphi 0, %s22
      %s36 = sphi 0, %s38
      %s39 = sphi 0, %s36
      %s40 = sphi 0, %s39
      %s56 = sphi 0, %s40
      %s62 = sphi 0, %s64
      %s65 = sphi 0, %s62
      %s66 = sphi 0, %s65
      %s82 = sphi 0, %s66
      %s88 = sphi 0, %s90
      %s91 = sphi 0, %s88
      %s92 = sphi 0, %s91
      %s108 = sphi 0, %s92
      %s116 = sphi 0, %s118
      %s119 = sphi 0, %s116
      %s120 = sphi 0, %s119
      %s136 = sphi 0, %s120
    $region4: #{tpu_custom_call.1} parent=1 // loop_header_branch
      %15 = sbr.rel (%p13) target = $region8
    $region5: #{tpu_custom_call.1} parent=1 // loop_body
      %s17 = ssub.s32 %s12, 1
      %s18 = ssub.s32 %s12, 2
      %s25 = sadd.s32 1, %s20
      %p26 = scmp.ge.s32.totalorder %s25, 1
      %s27 = scalar_select %p26, 0, %s25
      %s28 = sadd.s32 1, %s19
      %s29 = scalar_select %p26, %s28, %s19
      %p30 = scmp.ge.s32.totalorder %s29, 2
      %s31 = scalar_select %p30, 0, %s29
      %s32 = ssub.s32 %s19, %s31
      %s33 = ssub.s32 %s20, %s27
      %s34 = sor.u32 %s32, %s33
      %p35 = scmp.eq.s32.totalorder %s34, 0
      %s37 = sadd.s32 %s36, 1
      %s38 = scalar_select %p35, %s36, %s37
      %p41 = pneg %p35
      %p42 = scmp.eq.s32.totalorder %s12, 1
      %p43 = por %p41, %p42
      %p44 = scmp.ne.s32.totalorder %s36, %s39
      %p45 = scmp.eq.s32.totalorder %s12, 0
      %p46 = por %p44, %p45
      %p47 = scmp.ne.s32.totalorder %s36, %s39
      %p48 = scmp.eq.s32.totalorder %s17, 1
      %p49 = por %p47, %p48
      %p50 = scmp.ne.s32.totalorder %s39, %s40
      %p51 = scmp.eq.s32.totalorder %s17, 0
      %p52 = por %p50, %p51
      %p53 = scmp.ne.s32.totalorder %s39, %s40
      %p54 = scmp.eq.s32.totalorder %s18, 1
      %p55 = por %p53, %p54
      %p57 = scmp.ne.s32.totalorder %s40, %s56
      %p58 = scmp.eq.s32.totalorder %s18, 0
      %p59 = por %p57, %p58
      %s60 = ssub.s32 %s20, %s27
      %p61 = scmp.eq.s32.totalorder %s60, 0
      %s63 = sadd.s32 %s62, 1
      %s64 = scalar_select %p61, %s62, %s63
      %p67 = pneg %p61
      %p68 = scmp.eq.s32.totalorder %s12, 1
      %p69 = por %p67, %p68
      %p70 = scmp.ne.s32.totalorder %s62, %s65
      %p71 = scmp.eq.s32.totalorder %s12, 0
      %p72 = por %p70, %p71
      %p73 = scmp.ne.s32.totalorder %s62, %s65
      %p74 = scmp.eq.s32.totalorder %s17, 1
      %p75 = por %p73, %p74
      %p76 = scmp.ne.s32.totalorder %s65, %s66
      %p77 = scmp.eq.s32.totalorder %s17, 0
      %p78 = por %p76, %p77
      %p79 = scmp.ne.s32.totalorder %s65, %s66
      %p80 = scmp.eq.s32.totalorder %s18, 1
      %p81 = por %p79, %p80
      %p83 = scmp.ne.s32.totalorder %s66, %s82
      %p84 = scmp.eq.s32.totalorder %s18, 0
      %p85 = por %p83, %p84
      %s86 = ssub.s32 %s20, %s27
      %p87 = scmp.eq.s32.totalorder %s86, 0
      %s89 = sadd.s32 %s88, 1
      %s90 = scalar_select %p87, %s88, %s89
      %p93 = pneg %p87
      %p94 = scmp.eq.s32.totalorder %s12, 1
      %p95 = por %p93, %p94
      %p96 = scmp.ne.s32.totalorder %s88, %s91
      %p97 = scmp.eq.s32.totalorder %s12, 0
      %p98 = por %p96, %p97
      %p99 = scmp.ne.s32.totalorder %s88, %s91
      %p100 = scmp.eq.s32.totalorder %s17, 1
      %p101 = por %p99, %p100
      %p102 = scmp.ne.s32.totalorder %s91, %s92
      %p103 = scmp.eq.s32.totalorder %s17, 0
      %p104 = por %p102, %p103
      %p105 = scmp.ne.s32.totalorder %s91, %s92
      %p106 = scmp.eq.s32.totalorder %s18, 1
      %p107 = por %p105, %p106
      %p109 = scmp.ne.s32.totalorder %s92, %s108
      %p110 = scmp.eq.s32.totalorder %s18, 0
      %p111 = por %p109, %p110
      %s112 = ssub.s32 %s19, %s31
      %s113 = ssub.s32 %s20, %s27
      %s114 = sor.u32 %s112, %s113
      %p115 = scmp.eq.s32.totalorder %s114, 0
      %s117 = sadd.s32 %s116, 1
      %s118 = scalar_select %p115, %s116, %s117
      %p121 = pneg %p115
      %p122 = scmp.eq.s32.totalorder %s12, 1
      %p123 = por %p121, %p122
      %p124 = scmp.ne.s32.totalorder %s116, %s119
      %p125 = scmp.eq.s32.totalorder %s12, 0
      %p126 = por %p124, %p125
      %p127 = scmp.ne.s32.totalorder %s116, %s119
      %p128 = scmp.eq.s32.totalorder %s17, 1
      %p129 = por %p127, %p128
      %p130 = scmp.ne.s32.totalorder %s119, %s120
      %p131 = scmp.eq.s32.totalorder %s17, 0
      %p132 = por %p130, %p131
      %p133 = scmp.ne.s32.totalorder %s119, %s120
      %p134 = scmp.eq.s32.totalorder %s18, 1
      %p135 = por %p133, %p134
      %p137 = scmp.ne.s32.totalorder %s120, %s136
      %p138 = scmp.eq.s32.totalorder %s18, 0
      %p139 = por %p137, %p138
      %p140 = scmp.le.s32.totalorder 1, %s12
      %p141 = scmp.lt.s32.totalorder %s12, 3
      %p142 = pnand %p140, %p141
      %p143 = pneg %p142
      // Predicated region
      $region9: #{tpu_custom_call.1} parent=5 // pred_check
        _
      $region10: #{tpu_custom_call.1} parent=5 // pred_check_branch
        %145 = sbr.rel (%p142) target = $region12
      $region11: #{tpu_custom_call.1} parent=5 // pred_region
        %s146 = ssub.s32 %s12, 1
        // Predicated region
        $region13: #{tpu_custom_call.1} parent=11 // pred_check
          %p147 = pneg %p78
        $region14: #{tpu_custom_call.1} parent=11 // pred_check_branch
          %149 = sbr.rel (%p147) target = $region16
        $region15: #{tpu_custom_call.1} parent=11 // pred_region
          %p150 = scmp.lt.s32.totalorder %s22, 0
          %s151 = scalar_select %p150, %s22, 0
          %s152 = smul.addr %s151, 4
          %s153 = scalar_lea.vmem %s1, %s152
        $region16: #{tpu_custom_call.1} parent=11 // pred_fallthru
          _
        // Predicated region
        $region17: #{tpu_custom_call.1} parent=11 // pred_check
          %p154 = pneg %p104
        $region18: #{tpu_custom_call.1} parent=11 // pred_check_branch
          %156 = sbr.rel (%p154) target = $region20
        $region19: #{tpu_custom_call.1} parent=11 // pred_region
          %p157 = scmp.lt.s32.totalorder %s22, 0
          %s158 = scalar_select %p157, %s22, 0
          %s159 = smul.addr %s158, 4
          %s160 = scalar_lea.vmem %s2, %s159
        $region20: #{tpu_custom_call.1} parent=11 // pred_fallthru
          _
      $region12: #{tpu_custom_call.1} parent=5 // pred_fallthru
        _
      %p161 = scmp.lt.s32.totalorder %s12, 2
      // Predicated region
      $region21: #{tpu_custom_call.1} parent=5 // pred_check
        %p162 = pneg %p161
      $region22: #{tpu_custom_call.1} parent=5 // pred_check_branch
        %164 = sbr.rel (%p162) target = $region24
      $region23: #{tpu_custom_call.1} parent=5 // pred_region
        // Predicated region
        $region25: #{tpu_custom_call.1} parent=23 // pred_check
          %p165 = pneg %p46
        $region26: #{tpu_custom_call.1} parent=23 // pred_check_branch
          %167 = sbr.rel (%p165) target = $region28
        $region27: #{tpu_custom_call.1} parent=23 // pred_region
          %p168 = scmp.lt.s32.totalorder %s19, 1
          %s169 = scalar_select %p168, %s19, 1
          %p170 = scmp.lt.s32.totalorder %s20, 0
          %s171 = scalar_select %p170, %s20, 0
          %s172 = sadd.s32 %s171, %s169
          %s173 = smul.addr %s172, 4
          %s174 = scalar_lea.vmem %s0, %s173
        $region28: #{tpu_custom_call.1} parent=23 // pred_fallthru
          _
      $region24: #{tpu_custom_call.1} parent=5 // pred_fallthru
        _
      %p175 = scmp.le.s32.totalorder 1, %s12
      %p176 = scmp.lt.s32.totalorder %s12, 3
      %p177 = pnand %p175, %p176
      %p178 = pneg %p177
      // Predicated region
      $region29: #{tpu_custom_call.1} parent=5 // pred_check
        _
      $region30: #{tpu_custom_call.1} parent=5 // pred_check_branch
        %180 = sbr.rel (%p177) target = $region32
      $region31: #{tpu_custom_call.1} parent=5 // pred_region
        %s181 = ssub.s32 %s12, 1
        %p182 = scmp.lt.s32.totalorder %s21, 1
        %s183 = scalar_select %p182, %s21, 1
        %p184 = scmp.lt.s32.totalorder %s22, 0
        %s185 = scalar_select %p184, %s22, 0
        %s186 = sadd.s32 %s185, %s183
        %s187 = smul.addr %s186, 4
        %s188 = scalar_lea.vmem %s0, %s187
        %p189 = pneg %p52
        %p190 = pneg %p49
        %p191 = scmp.lt.s32.totalorder %s22, 0
        %s192 = scalar_select %p191, %s22, 0
        %s193 = smul.addr %s192, 4
        %s194 = scalar_lea.vmem %s1, %s193
        %p195 = pneg %p78
        %p196 = pneg %p75
        %p197 = scmp.lt.s32.totalorder %s22, 0
        %s198 = scalar_select %p197, %s22, 0
        %s199 = smul.addr %s198, 4
        %s200 = scalar_lea.vmem %s2, %s199
        %p201 = pneg %p104
        %p202 = pneg %p101
        %p203 = pneg %p132
        %p204 = pneg %p129
        %s205 = sand.u32 %s119, 1
        %s206 = scalar_lea.sflag [#allocation3], %s205
        %s207 = sand.u32 %s119, 1
        %s208 = smul.addr %s207, 4
        %s209 = scalar_lea.vmem [#allocation2], %s208
        %p210 = scmp.lt.s32.totalorder %s21, 1
        %s211 = scalar_select %p210, %s21, 1
        %p212 = scmp.lt.s32.totalorder %s22, 0
        %s213 = scalar_select %p212, %s22, 0
        %s214 = sadd.s32 %s213, %s211
        %s215 = smul.addr %s214, 4
        %s216 = scalar_lea.vmem %s0, %s215
        %p217 = scmp.lt.s32.totalorder %s22, 0
        %s218 = scalar_select %p217, %s22, 0
        %s219 = smul.addr %s218, 4
        %s220 = scalar_lea.vmem %s1, %s219
        %p221 = scmp.lt.s32.totalorder %s22, 0
        %s222 = scalar_select %p221, %s22, 0
        %s223 = smul.addr %s222, 4
        %s224 = scalar_lea.vmem %s2, %s223
        %v225 = vld [vmem:[%s216] sm:$0xf]
        %vm226 = vcmask 125952
        %v227 = vsel %vm226, %v225, 0.0
        %228 = vadd.xlane.f32.xlu0 %v227
        %v229 = vpop.xlane.xlu0 %228
        %v230 = vrcp.pop 16.0
        %v231 = vmul.f32 %v229, %v230
        %v232 = vsub.f32 %v225, %v231
        %v233 = vmul.f32 %v232, %v232
        %v234 = vsel %vm226, %v233, 0.0
        %235 = vadd.xlane.f32.xlu0 %v234
        %v236 = vpop.xlane.xlu0 %235
        %v237 = vmul.f32 %v236, %v230
        %v238 = vadd.f32 %v237, 1e-05
        %v239 = vrsqrt.pop %v238
        %v240 = vld [vmem:[%s220] sm:$0xf]
        %v241 = vld [vmem:[%s224] sm:$0xf]
        %v242 = vmul.f32 %v240, %v239
        %v243 = vmul.f32 %v231, %v242
        %v244 = vsub.f32 %v241, %v243
        %246 = vset.pattern.permute.xlu0 0
        %247 = vperm.xlu0 %246, %v242
        %v248 = vpop.permute.xlu0 %247
        %v250 = vmul.f32 %v225, %v248
        %252 = vset.pattern.permute.xlu0 0
        %253 = vperm.xlu0 %252, %v244
        %v254 = vpop.permute.xlu0 %253
        %v256 = vadd.f32 %v250, %v254
        %257 = vst.msk [vmem:[%s209] sm:$0xf] %vm226, %v256
        %s258 = sand.u32 %s119, 1
        %s259 = scalar_lea.sflag [#allocation3], %s258
        %s260 = sand.u32 %s119, 1
        %s261 = smul.addr %s260, 4
        %s262 = scalar_lea.vmem [#allocation2], %s261
        // Predicated region
        $region33: #{tpu_custom_call.1} parent=31 // pred_check
          %p263 = pneg %p129
        $region34: #{tpu_custom_call.1} parent=31 // pred_check_branch
          %265 = sbr.rel (%p263) target = $region36
        $region35: #{tpu_custom_call.1} parent=31 // pred_region
          %s267 = ssub.s32 64, 64
          %268 = vsyncadd %s259, %s267
          %s269 = sadd.s32 %s22, %s21
          %s270 = smul.addr %s269, 64
          %s271 = scalar_lea.hbm %s3, %s270
          %s273 = sshll.u32 %s262, 4
          %s274 = int_to_ptr.vmem [resolvable:$true] %s273
          %276 = dma.vmem_to_hbm [thread:$0]  %s274, 64, %s271, %s259
        $region36: #{tpu_custom_call.1} parent=31 // pred_fallthru
          _
      $region32: #{tpu_custom_call.1} parent=5 // pred_fallthru
        _
      %p277 = scmp.le.s32.totalorder 2, %s12
      // Predicated region
      $region37: #{tpu_custom_call.1} parent=5 // pred_check
        %p278 = pneg %p277
      $region38: #{tpu_custom_call.1} parent=5 // pred_check_branch
        %280 = sbr.rel (%p278) target = $region40
      $region39: #{tpu_custom_call.1} parent=5 // pred_region
        %s281 = ssub.s32 %s12, 2
        // Predicated region
        $region41: #{tpu_custom_call.1} parent=39 // pred_check
          %p282 = pneg %p135
        $region42: #{tpu_custom_call.1} parent=39 // pred_check_branch
          %284 = sbr.rel (%p282) target = $region44
        $region43: #{tpu_custom_call.1} parent=39 // pred_region
          %s285 = sand.u32 %s120, 1
          %s286 = scalar_lea.sflag [#allocation3], %s285
          %s287 = sand.u32 %s120, 1
          %s288 = smul.addr %s287, 4
          %s289 = scalar_lea.vmem [#allocation2], %s288
          %290 = dma.done %s286, 64
        $region44: #{tpu_custom_call.1} parent=39 // pred_fallthru
          _
      $region40: #{tpu_custom_call.1} parent=5 // pred_fallthru
        _
    $region6: #{tpu_custom_call.1} parent=1 // loop_footer
      %s16 = sadd.s32 1, %s12
    $region7: #{tpu_custom_call.1} parent=1 // loop_footer_branch
      %11 = sbr.rel target = $region3
    $region8: #{tpu_custom_call.1} parent=1 // loop_exit
      _
    %291 = vsyncpa [#allocation3], 1
    %s292 = scalar_lea.sflag [#allocation3], 1
    %293 = vsyncpa %s292, 1

</llo_original>
